<compile_context>
chip_gen: v5e
topology: v5e:2x2
jax: 0.10.0
libtpu: 0.0.40
codegen_flags: <defaults>
</compile_context>

<pallas_src>
import numpy as np
import jax
import jax.numpy as jnp
from jax import lax
from jax.experimental import pallas as pl
from jax.experimental.pallas import tpu as pltpu


def _cdiv(a, b):
    return -(-a // b)


# ---------------------------------------------------------------------------
# SpatialGraphConv message + scatter-add kernel (per-split partial aggregates)
# ---------------------------------------------------------------------------
def _make_conv_kernel(c_in, hid, n_pad, te, use_bf16):
    dt = jnp.bfloat16 if use_bf16 else jnp.float32

    def kernel(rel_ref, src_ref, dst_ref, hrep_ref, win_ref, bin_ref, r_ref,
               out_ref, agg_ref):
        step = pl.program_id(1)                                  # inner (reduction) axis

        @pl.when(step == 0)
        def _init():
            agg_ref[...] = jnp.zeros_like(agg_ref)

        # lin_in as two VPU broadcast-FMAs (K=2 -> not worth an MXU matmul)
        rel = rel_ref[...]                                       # [te, 2]
        w_in = win_ref[...]                                      # [2, c_in*hid]
        ss = jnp.maximum(
            rel[:, 0:1] * w_in[0:1, :] + rel[:, 1:2] * w_in[1:2, :] + bin_ref[...],
            0.0)                                                 # [te, c_in*hid]

        # gather the pre-replicated source-node features (replicate matmul hoisted to wrapper)
        gsrc = (src_ref[...] ==
                lax.broadcasted_iota(jnp.int32, (te, n_pad), 1)).astype(dt)
        x_rep = jnp.dot(gsrc, hrep_ref[...].astype(dt),
                        preferred_element_type=jnp.float32)      # [te, c_in*hid]

        # per-in-channel product + group-sum (lane-dense constant matrix R)
        msg = jnp.dot((x_rep * ss).astype(dt), r_ref[...].astype(dt),
                      preferred_element_type=jnp.float32)        # [te, hid]

        # scatter-add: destination one-hot built already transposed (dst is a [1, te] row)
        gdst_t = (lax.broadcasted_iota(jnp.int32, (n_pad, te), 0) ==
                  dst_ref[...]).astype(dt)                       # [n_pad, te]
        agg_ref[...] += jnp.dot(gdst_t, msg.astype(dt),
                                preferred_element_type=jnp.float32)

        @pl.when(step == pl.num_programs(1) - 1)
        def _finalize():
            out_ref[0] = agg_ref[...]                            # per-split partial aggregate

    return kernel


def _conv_aggregate(rel, src_col, dst_row, h_rep, win_t, bin_row, r_mat,
                    n_pad, hid, c_in, te, n_splits, tiles_per_split, use_bf16):
    tps = tiles_per_split
    return pl.pallas_call(
        _make_conv_kernel(c_in, hid, n_pad, te, use_bf16),
        out_shape=jax.ShapeDtypeStruct((n_splits, n_pad, hid), jnp.float32),
        grid=(n_splits, tiles_per_split),
        in_specs=[
            pl.BlockSpec((te, 2), lambda c, i: (c * tps + i, 0)),        # rel (edge-tiled)
            pl.BlockSpec((te, 1), lambda c, i: (c * tps + i, 0)),        # src indices (col)
            pl.BlockSpec((1, te), lambda c, i: (0, c * tps + i)),        # dst indices (lane row)
            pl.BlockSpec((n_pad, c_in * hid), lambda c, i: (0, 0)),      # h_rep (resident)
            pl.BlockSpec((2, c_in * hid), lambda c, i: (0, 0)),          # W_in^T
            pl.BlockSpec((1, c_in * hid), lambda c, i: (0, 0)),          # b_in
            pl.BlockSpec((c_in * hid, hid), lambda c, i: (0, 0)),        # group-sum matrix R
        ],
        out_specs=pl.BlockSpec((1, n_pad, hid), lambda c, i: (c, 0, 0)),
        scratch_shapes=[pltpu.VMEM((n_pad, hid), jnp.float32)],
        compiler_params=pltpu.CompilerParams(
            dimension_semantics=("parallel", "arbitrary"),  # split axis megacore-able (v7x)
            vmem_limit_bytes=32 * 1024 * 1024),
    )(rel, src_col, dst_row, h_rep, win_t, bin_row, r_mat)


# ---------------------------------------------------------------------------
# Edge-MLP decoder: lane-transposed, gather+lin1 fused into one matmul
# ---------------------------------------------------------------------------
def _make_decoder_kernel(n_pad, hid, te, use_bf16):
    dt = jnp.bfloat16 if use_bf16 else jnp.float32

    def kernel(src_ref, dst_ref, ab_ref, b1_ref, w2_ref, b2_ref, w3_ref, b3_ref,
               out_ref):
        # stacked one-hot [gsrc^T ; gdst^T] of shape [2*n_pad, te], built with one compare
        iota2 = lax.broadcasted_iota(jnp.int32, (2 * n_pad, te), 0)
        idx2 = jnp.where(iota2 < n_pad, src_ref[...], dst_ref[...] + n_pad)
        g = (iota2 == idx2).astype(dt)                                      # [2*n_pad, te]

        # lin1(concat(h[src], h[dst])): gather + W1 fused -> one [hid, 2*n_pad] x [2*n_pad, te]
        z = jnp.maximum(
            jnp.dot(ab_ref[...].astype(dt), g,
                    preferred_element_type=jnp.float32) + b1_ref[...], 0.0)  # [hid, te]
        z = jnp.maximum(
            jnp.dot(w2_ref[...].astype(dt), z.astype(dt),
                    preferred_element_type=jnp.float32) + b2_ref[...], 0.0)  # [hid, te]
        logits = jnp.dot(w3_ref[...].astype(dt), z.astype(dt),
                         preferred_element_type=jnp.float32) + b3_ref[...]   # [1, te]
        out_ref[0] = jax.nn.sigmoid(logits)                                  # sigmoid=True

    return kernel


def _decode(src_row, dst_row, ab, b1_col, w2, b2_col, w3, b3,
            n_pad, hid, te, n_tiles, use_bf16):
    return pl.pallas_call(
        _make_decoder_kernel(n_pad, hid, te, use_bf16),
        out_shape=jax.ShapeDtypeStruct((n_tiles, 1, te), jnp.float32),
        grid=(n_tiles,),
        in_specs=[
            pl.BlockSpec((1, te), lambda i: (0, i)),              # src indices (lane row)
            pl.BlockSpec((1, te), lambda i: (0, i)),              # dst indices (lane row)
            pl.BlockSpec((hid, 2 * n_pad), lambda i: (0, 0)),     # [W1a@h^T | W1b@h^T]
            pl.BlockSpec((hid, 1), lambda i: (0, 0)),             # b1 (column)
            pl.BlockSpec((hid, hid), lambda i: (0, 0)),           # W2
            pl.BlockSpec((hid, 1), lambda i: (0, 0)),             # b2 (column)
            pl.BlockSpec((1, hid), lambda i: (0, 0)),             # W3
            pl.BlockSpec((1, 1), lambda i: (0, 0)),               # b3
        ],
        out_specs=pl.BlockSpec((1, 1, te), lambda i: (i, 0, 0)),
        compiler_params=pltpu.CompilerParams(
            dimension_semantics=("parallel",),                    # independent edge tiles
            vmem_limit_bytes=32 * 1024 * 1024),
    )(src_row, dst_row, ab, b1_col, w2, b2_col, w3, b3)


# ---------------------------------------------------------------------------
# Parameters (PyTorch Linear layout: W [out, in], b [out]) and forward wrapper
# ---------------------------------------------------------------------------
def init_params(key, input_channels, hidden):
    ks = jax.random.split(key, 9)

    def lin(k, out_d, in_d, gain=1.0):
        k1, k2 = jax.random.split(k)
        w = gain * jax.random.normal(k1, (out_d, in_d), jnp.float32) / np.sqrt(in_d)
        b = jax.random.normal(k2, (out_d,), jnp.float32) * 0.05
        return w, b

    p = {}
    chans = [input_channels, hidden, hidden]
    for i, c in enumerate(chans):
        # gain=0.25 keeps toy activations O(1) through 3 aggregating conv layers so the
        # f32 kernel-vs-reference check stays tight (params are arbitrary test weights).
        p[f'conv{i + 1}_in'] = lin(ks[2 * i], c * hidden, 2, gain=0.25)     # coors=2 -> c*H
        p[f'conv{i + 1}_out'] = lin(ks[2 * i + 1], hidden, hidden, gain=0.25)  # H -> H
    p['dec1'] = lin(ks[6], hidden, 2 * hidden)
    p['dec2'] = lin(ks[7], hidden, hidden)
    p['dec3'] = lin(ks[8], 1, hidden)
    return p


def spatial_gcn_forward(x, edge_index, params, input_channels, hidden,
                        edge_tile=512, use_bf16=False):
    x = x.astype(jnp.float32)
    n_nodes = int(x.shape[0])
    n_edges = int(edge_index.shape[1])
    pos, feat = x[:, :2], x[:, 2:]
    src = edge_index[0].astype(jnp.int32)
    dst = edge_index[1].astype(jnp.int32)

    # node padding to a sublane multiple (unmasked accumulator RMW)
    n_pad = _cdiv(n_nodes, 8) * 8

    # edge tile: lane multiple (128); pad E with sentinel index n_pad so padded edges
    # gather zeros and scatter nothing.  2-way split feeds v7x megacore on the conv grid.
    te = max(128, _cdiv(int(edge_tile), 128) * 128)
    raw_tiles = _cdiv(n_edges, te)
    n_splits = 2 if raw_tiles >= 2 else 1
    tiles_per_split = _cdiv(raw_tiles, n_splits)
    n_tiles = n_splits * tiles_per_split
    e_pad = n_tiles * te
    pad_e = e_pad - n_edges

    rel = pos[src] - pos[dst]                                   # pos_j - pos_i  [E, 2]
    if pad_e:
        rel = jnp.concatenate([rel, jnp.zeros((pad_e, 2), jnp.float32)], axis=0)
        src = jnp.concatenate([src, jnp.full((pad_e,), n_pad, jnp.int32)])
        dst = jnp.concatenate([dst, jnp.full((pad_e,), n_pad, jnp.int32)])
    src_col = src[:, None]                                      # [E_pad, 1]
    src_row = src[None, :]                                      # [1, E_pad]
    dst_row = dst[None, :]                                      # [1, E_pad]

    h = feat
    if n_pad > n_nodes:
        h = jnp.concatenate(
            [h, jnp.zeros((n_pad - n_nodes, h.shape[1]), jnp.float32)], axis=0)

    # ---- encoder: 3 SpatialGraphConv layers ----
    chans = [input_channels, hidden, hidden]
    for i, c in enumerate(chans):
        wi, bi = params[f'conv{i + 1}_in']                      # [c*H, 2], [c*H]
        wo, bo = params[f'conv{i + 1}_out']                     # [H, H],   [H]
        # hoisted replicate matmul: h_rep == h @ kron(I_c, 1_{1xH})   (tiny O(N) XLA op)
        h_rep = jnp.repeat(h, hidden, axis=1)                   # [n_pad, c*H]
        r_mat = jnp.asarray(np.kron(np.ones((c, 1), np.float32),
                                    np.eye(hidden, dtype=np.float32)))   # [c*H, H]
        partials = _conv_aggregate(rel, src_col, dst_row, h_rep,
                                   jnp.asarray(wi).T, jnp.asarray(bi)[None, :], r_mat,
                                   n_pad, hidden, c, te, n_splits, tiles_per_split,
                                   use_bf16)
        agg = partials.sum(axis=0)                              # combine core-split partials
        # update: dropout identity (eval); lin_out applied here (tiny [N,H]x[H,H]) so the
        # split partial aggregates can be summed before the affine map.
        h = agg @ jnp.asarray(wo).T + jnp.asarray(bo)[None, :]

    # ---- decoder: relu(W1 [h_src;h_dst]+b1) -> relu(W2 .+b2) -> sigmoid(W3 .+b3) ----
    w1, b1 = params['dec1']                                     # [H, 2H], [H]
    w2, b2 = params['dec2']                                     # [H, H],  [H]
    w3, b3 = params['dec3']                                     # [1, H],  [1]
    w1 = jnp.asarray(w1)
    ab = jnp.concatenate([w1[:, :hidden] @ h.T, w1[:, hidden:] @ h.T], axis=1)  # [H, 2*n_pad]
    out = _decode(src_row, dst_row, ab, jnp.asarray(b1)[:, None],
                  jnp.asarray(w2), jnp.asarray(b2)[:, None],
                  jnp.asarray(w3), jnp.asarray(b3).reshape(1, 1),
                  n_pad, hidden, te, n_tiles, use_bf16)
    return out.reshape(-1)[:n_edges]                            # z.view(-1)


def reference_forward(x, edge_index, params, input_channels, hidden):
    """Pure-JAX reference for verification (mirrors the PyTorch module)."""
    x = x.astype(jnp.float32)
    n_nodes = x.shape[0]
    pos, h = x[:, :2], x[:, 2:]
    src, dst = edge_index[0], edge_index[1]
    rel = pos[src] - pos[dst]

    def conv(h, name, c_in):
        wi, bi = params[f'{name}_in']
        wo, bo = params[f'{name}_out']
        ss = jax.nn.relu(rel @ wi.T + bi).reshape(-1, c_in, hidden)
        msg = (ss * h[src][:, :, None]).sum(axis=1)
        agg = jnp.zeros((n_nodes, hidden), jnp.float32).at[dst].add(msg)
        return agg @ wo.T + bo

    h = conv(h, 'conv1', input_channels)
    h = conv(h, 'conv2', hidden)
    h = conv(h, 'conv3', hidden)
    w1, b1 = params['dec1']
    w2, b2 = params['dec2']
    w3, b3 = params['dec3']
    z = jnp.concatenate([h[src], h[dst]], axis=-1)
    z = jax.nn.relu(z @ w1.T + b1)
    z = jax.nn.relu(z @ w2.T + b2)
    z = jax.nn.sigmoid(z @ w3.T + b3)
    return z.reshape(-1)


if __name__ == "__main__":
    N, E = 16, 600
    INPUT_CHANNELS, HIDDEN = 4, 32
    EDGE_TILE = 128   # small tile so multi-tile accumulation, the 2-way core split and the
                      # edge-padding path are all exercised at this toy size

    key = jax.random.PRNGKey(0)
    kx, ke, kp = jax.random.split(key, 3)
    x = jax.random.normal(kx, (N, 2 + INPUT_CHANNELS), jnp.float32)  # [:, :2]=pos, [:, 2:]=feat
    edge_index = jax.random.randint(ke, (2, E), 0, N, dtype=jnp.int32)
    params = init_params(kp, INPUT_CHANNELS, HIDDEN)

    out = spatial_gcn_forward(x, edge_index, params, INPUT_CHANNELS, HIDDEN,
                              edge_tile=EDGE_TILE)
    out = jax.block_until_ready(out)
    assert out.shape == (E,)

    ref = reference_forward(x, edge_index, params, INPUT_CHANNELS, HIDDEN)
    np.testing.assert_allclose(np.asarray(out), np.asarray(ref), rtol=2e-3, atol=2e-3)
    print("KERNEL_OK")
</pallas_src>

<mosaic_0001>
module attributes {stable_mosaic.version = 11 : i64} {
  func.func @kernel(%arg0: i32, %arg1: i32, %arg2: memref<128x2xf32, #tpu.memory_space<vmem>>, %arg3: memref<128x1xi32, #tpu.memory_space<vmem>>, %arg4: memref<1x128xi32, #tpu.memory_space<vmem>>, %arg5: memref<16x128xf32, #tpu.memory_space<vmem>>, %arg6: memref<2x128xf32, #tpu.memory_space<vmem>>, %arg7: memref<1x128xf32, #tpu.memory_space<vmem>>, %arg8: memref<128x32xf32, #tpu.memory_space<vmem>>, %arg9: memref<1x16x32xf32, #tpu.memory_space<vmem>>, %arg10: memref<16x32xf32, #tpu.memory_space<vmem>>) attributes {dimension_semantics = [#tpu.dimension_semantics<parallel>, #tpu.dimension_semantics<arbitrary>], iteration_bounds = array<i64: 2, 3>, scalar_prefetch = 0 : i64, scratch_operands = 1 : i64, tpu.core_type = #tpu.core_type<tc>, window_params = [{transform_indices = @transform_0, window_bounds = array<i64: 128, 2>}, {transform_indices = @transform_1, window_bounds = array<i64: 128, 1>}, {transform_indices = @transform_2, window_bounds = array<i64: 1, 128>}, {pipeline_mode = #tpu.pipeline_mode<synchronous>, transform_indices = @transform_3, window_bounds = array<i64: 16, 128>}, {pipeline_mode = #tpu.pipeline_mode<synchronous>, transform_indices = @transform_4, window_bounds = array<i64: 2, 128>}, {pipeline_mode = #tpu.pipeline_mode<synchronous>, transform_indices = @transform_5, window_bounds = array<i64: 1, 128>}, {pipeline_mode = #tpu.pipeline_mode<synchronous>, transform_indices = @transform_6, window_bounds = array<i64: 128, 32>}, {transform_indices = @transform_7, window_bounds = array<i64: 1, 16, 32>}]} {
    %c0_i32 = arith.constant 0 : i32
    %0 = arith.cmpi eq, %arg1, %c0_i32 : i32
    %1 = arith.extui %0 : i1 to i32
    %c0_i32_0 = arith.constant 0 : i32
    %2 = arith.cmpi ne, %1, %c0_i32_0 : i32
    scf.if %2 {
      %cst_22 = arith.constant 0.000000e+00 : f32
      %45 = vector.broadcast %cst_22 : f32 to vector<16x32xf32>
      %c0_23 = arith.constant 0 : index
      %c0_24 = arith.constant 0 : index
      %46 = vector.load %arg10[%c0_23, %c0_24] : memref<16x32xf32, #tpu.memory_space<vmem>>, vector<16x32xf32>
      tpu.vector_store %arg10[%c0_23, %c0_24], %45 {strides = array<i32>} : memref<16x32xf32, #tpu.memory_space<vmem>>, vector<16x32xf32>,
    } else {
    }
    %c0 = arith.constant 0 : index
    %c0_1 = arith.constant 0 : index
    %3 = vector.load %arg2[%c0, %c0_1] : memref<128x2xf32, #tpu.memory_space<vmem>>, vector<128x2xf32>
    %c0_2 = arith.constant 0 : index
    %c0_3 = arith.constant 0 : index
    %4 = vector.load %arg6[%c0_2, %c0_3] : memref<2x128xf32, #tpu.memory_space<vmem>>, vector<2x128xf32>
    %5 = vector.extract_strided_slice %3 {offsets = [0, 0], sizes = [128, 1], strides = [1, 1]} : vector<128x2xf32> to vector<128x1xf32>
    %6 = vector.extract_strided_slice %4 {offsets = [0, 0], sizes = [1, 128], strides = [1, 1]} : vector<2x128xf32> to vector<1x128xf32>
    %7 = vector.broadcast %5 : vector<128x1xf32> to vector<128x128xf32>
    %8 = vector.broadcast %6 : vector<1x128xf32> to vector<128x128xf32>
    %9 = arith.mulf %7, %8 : vector<128x128xf32>
    %10 = vector.extract_strided_slice %3 {offsets = [0, 1], sizes = [128, 1], strides = [1, 1]} : vector<128x2xf32> to vector<128x1xf32>
    %11 = vector.extract_strided_slice %4 {offsets = [1, 0], sizes = [1, 128], strides = [1, 1]} : vector<2x128xf32> to vector<1x128xf32>
    %12 = vector.broadcast %10 : vector<128x1xf32> to vector<128x128xf32>
    %13 = vector.broadcast %11 : vector<1x128xf32> to vector<128x128xf32>
    %14 = arith.mulf %12, %13 : vector<128x128xf32>
    %15 = arith.addf %9, %14 : vector<128x128xf32>
    %c0_4 = arith.constant 0 : index
    %c0_5 = arith.constant 0 : index
    %16 = vector.load %arg7[%c0_4, %c0_5] : memref<1x128xf32, #tpu.memory_space<vmem>>, vector<1x128xf32>
    %17 = vector.broadcast %16 : vector<1x128xf32> to vector<128x128xf32>
    %18 = arith.addf %15, %17 : vector<128x128xf32>
    %cst = arith.constant 0.000000e+00 : f32
    %19 = vector.broadcast %cst : f32 to vector<128x128xf32>
    %20 = arith.maximumf %18, %19 : vector<128x128xf32>
    %c0_6 = arith.constant 0 : index
    %c0_7 = arith.constant 0 : index
    %21 = vector.load %arg3[%c0_6, %c0_7] : memref<128x1xi32, #tpu.memory_space<vmem>>, vector<128x1xi32>
    %22 = tpu.iota {dimensions = array<i32: 1>} : vector<128x16xi32>
    %23 = vector.broadcast %21 : vector<128x1xi32> to vector<128x16xi32>
    %24 = arith.cmpi eq, %23, %22 : vector<128x16xi32>
    %25 = arith.extui %24 : vector<128x16xi1> to vector<128x16xi32>
    %26 = arith.sitofp %25 : vector<128x16xi32> to vector<128x16xf32>
    %c0_8 = arith.constant 0 : index
    %c0_9 = arith.constant 0 : index
    %27 = vector.load %arg5[%c0_8, %c0_9] : memref<16x128xf32, #tpu.memory_space<vmem>>, vector<16x128xf32>
    %cst_10 = arith.constant dense<0.000000e+00> : vector<128x128xf32>
    %28 = tpu.matmul %26, %27, %cst_10 {dimension_numbers = #tpu.dot_dimension_numbers<[1], [0], [0], [1], [0, 0, 1, 1], [], []>} : vector<128x16xf32>, vector<16x128xf32>, vector<128x128xf32> -> vector<128x128xf32>
    %29 = arith.mulf %28, %20 : vector<128x128xf32>
    %c0_11 = arith.constant 0 : index
    %c0_12 = arith.constant 0 : index
    %30 = vector.load %arg8[%c0_11, %c0_12] : memref<128x32xf32, #tpu.memory_space<vmem>>, vector<128x32xf32>
    %cst_13 = arith.constant dense<0.000000e+00> : vector<128x32xf32>
    %31 = tpu.matmul %29, %30, %cst_13 {dimension_numbers = #tpu.dot_dimension_numbers<[1], [0], [0], [1], [0, 0, 1, 1], [], []>} : vector<128x128xf32>, vector<128x32xf32>, vector<128x32xf32> -> vector<128x32xf32>
    %32 = tpu.iota {dimensions = array<i32: 0>} : vector<16x128xi32>
    %c0_14 = arith.constant 0 : index
    %c0_15 = arith.constant 0 : index
    %33 = vector.load %arg4[%c0_14, %c0_15] : memref<1x128xi32, #tpu.memory_space<vmem>>, vector<1x128xi32>
    %34 = vector.broadcast %33 : vector<1x128xi32> to vector<16x128xi32>
    %35 = arith.cmpi eq, %32, %34 : vector<16x128xi32>
    %36 = arith.extui %35 : vector<16x128xi1> to vector<16x128xi32>
    %37 = arith.sitofp %36 : vector<16x128xi32> to vector<16x128xf32>
    %c0_16 = arith.constant 0 : index
    %c0_17 = arith.constant 0 : index
    %38 = vector.load %arg10[%c0_16, %c0_17] : memref<16x32xf32, #tpu.memory_space<vmem>>, vector<16x32xf32>
    %cst_18 = arith.constant dense<0.000000e+00> : vector<16x32xf32>
    %39 = tpu.matmul %37, %31, %cst_18 {dimension_numbers = #tpu.dot_dimension_numbers<[1], [0], [0], [1], [0, 0, 1, 1], [], []>} : vector<16x128xf32>, vector<128x32xf32>, vector<16x32xf32> -> vector<16x32xf32>
    %40 = arith.addf %38, %39 : vector<16x32xf32>
    %c0_19 = arith.constant 0 : index
    %c0_20 = arith.constant 0 : index
    %41 = vector.load %arg10[%c0_19, %c0_20] : memref<16x32xf32, #tpu.memory_space<vmem>>, vector<16x32xf32>
    tpu.vector_store %arg10[%c0_19, %c0_20], %40 {strides = array<i32>} : memref<16x32xf32, #tpu.memory_space<vmem>>, vector<16x32xf32>,
    %c2_i32 = arith.constant 2 : i32
    %42 = arith.cmpi eq, %arg1, %c2_i32 : i32
    %43 = arith.extui %42 : i1 to i32
    %c0_i32_21 = arith.constant 0 : i32
    %44 = arith.cmpi ne, %43, %c0_i32_21 : i32
    scf.if %44 {
      %c0_22 = arith.constant 0 : index
      %c0_23 = arith.constant 0 : index
      %45 = vector.load %arg10[%c0_22, %c0_23] : memref<16x32xf32, #tpu.memory_space<vmem>>, vector<16x32xf32>
      %c0_24 = arith.constant 0 : index
      %c0_25 = arith.constant 0 : index
      %c0_26 = arith.constant 0 : index
      %46 = vector.load %arg9[%c0_24, %c0_25, %c0_26] : memref<1x16x32xf32, #tpu.memory_space<vmem>>, vector<1x16x32xf32>
      %47 = vector.shape_cast %46 : vector<1x16x32xf32> to vector<16x32xf32>
      %48 = vector.shape_cast %45 : vector<16x32xf32> to vector<1x16x32xf32>
      tpu.vector_store %arg9[%c0_24, %c0_25, %c0_26], %48 {strides = array<i32>} : memref<1x16x32xf32, #tpu.memory_space<vmem>>, vector<1x16x32xf32>,
    } else {
    }
    return
  }
  func.func @transform_0(%arg0: i32, %arg1: i32) -> (i32, i32) {
    %c3_i32 = arith.constant 3 : i32
    %0 = arith.muli %arg0, %c3_i32 : i32
    %1 = arith.addi %0, %arg1 : i32
    %c0_i32 = arith.constant 0 : i32
    %c0_i32_0 = arith.constant 0 : i32
    return %1, %c0_i32 : i32, i32
  }
  func.func @transform_1(%arg0: i32, %arg1: i32) -> (i32, i32) {
    %c3_i32 = arith.constant 3 : i32
    %0 = arith.muli %arg0, %c3_i32 : i32
    %1 = arith.addi %0, %arg1 : i32
    %c0_i32 = arith.constant 0 : i32
    %c0_i32_0 = arith.constant 0 : i32
    return %1, %c0_i32 : i32, i32
  }
  func.func @transform_2(%arg0: i32, %arg1: i32) -> (i32, i32) {
    %c3_i32 = arith.constant 3 : i32
    %0 = arith.muli %arg0, %c3_i32 : i32
    %1 = arith.addi %0, %arg1 : i32
    %c0_i32 = arith.constant 0 : i32
    %c0_i32_0 = arith.constant 0 : i32
    return %c0_i32, %1 : i32, i32
  }
  func.func @transform_3(%arg0: i32, %arg1: i32) -> (i32, i32) {
    %c0_i32 = arith.constant 0 : i32
    %c0_i32_0 = arith.constant 0 : i32
    %c0_i32_1 = arith.constant 0 : i32
    return %c0_i32, %c0_i32_0 : i32, i32
  }
  func.func @transform_4(%arg0: i32, %arg1: i32) -> (i32, i32) {
    %c0_i32 = arith.constant 0 : i32
    %c0_i32_0 = arith.constant 0 : i32
    %c0_i32_1 = arith.constant 0 : i32
    return %c0_i32, %c0_i32_0 : i32, i32
  }
  func.func @transform_5(%arg0: i32, %arg1: i32) -> (i32, i32) {
    %c0_i32 = arith.constant 0 : i32
    %c0_i32_0 = arith.constant 0 : i32
    %c0_i32_1 = arith.constant 0 : i32
    return %c0_i32, %c0_i32_0 : i32, i32
  }
  func.func @transform_6(%arg0: i32, %arg1: i32) -> (i32, i32) {
    %c0_i32 = arith.constant 0 : i32
    %c0_i32_0 = arith.constant 0 : i32
    %c0_i32_1 = arith.constant 0 : i32
    return %c0_i32, %c0_i32_0 : i32, i32
  }
  func.func @transform_7(%arg0: i32, %arg1: i32) -> (i32, i32, i32) {
    %c0_i32 = arith.constant 0 : i32
    %c0_i32_0 = arith.constant 0 : i32
    %c0_i32_1 = arith.constant 0 : i32
    return %arg0, %c0_i32, %c0_i32_0 : i32, i32, i32
  }
}

</mosaic_0001>

<llo_original>
// kernel: tpu_custom_call.1
$region0: #{tpu_custom_call.1}
  #allocation0 [shape = 'u32[]', space=smem, size = 0x4, offset = 0x4, fixed_abs, tag = 'smem constant byte address 0x4 - core index']
  #allocation1 [shape = 'u32[72,128]{1,0:T(1,128)}', space=vmem, size = 0x9000, scoped, tag = 'internal scratch']
  #allocation2 [shape = 'f32[16,32]{1,0:T(8,128)}', space=vmem, size = 0x2000, scoped, tag = 'scratch operand']
  %s0 = inlined_call_operand.vmem [shape: f32[768,2], index: 0, kind: input, shape index: {}]
  %s1 = inlined_call_operand.vmem [shape: s32[768,1], index: 1, kind: input, shape index: {}]
  %s2 = inlined_call_operand.vmem [shape: s32[1,768], index: 2, kind: input, shape index: {}]
  %s3 = inlined_call_operand.vmem [shape: f32[16,128], index: 3, kind: input, shape index: {}]
  %s4 = inlined_call_operand.vmem [shape: f32[2,128], index: 4, kind: input, shape index: {}]
  %s5 = inlined_call_operand.vmem [shape: f32[1,128], index: 5, kind: input, shape index: {}]
  %s6 = inlined_call_operand.vmem [shape: f32[128,32], index: 6, kind: input, shape index: {}]
  %s7 = inlined_call_operand.hbm [shape: f32[2,16,32], index: 7, kind: output, shape index: {}]
  %s8 = sld [smem:[#allocation0]]
  $region69: #{tpu_custom_call.1} parent=0
    _
  %s10 = ssub.s32 1, %s8
  %s11 = scalar_select 0, %s10, %s8
  $region1: #{tpu_custom_call.1} parent=0
    #allocation3 [shape = 'u8[16384]{0}', space=vmem, size = 0x4000, scoped, tag = 'output window, operand 0']
    #allocation4 [shape = 's32[2]{0}', space=sflag, size = 0x8, scoped, tag = 'scoped memory for tpu_custom_call.1']
    %12 = vsyncpa [#allocation4], 0
    %s13 = scalar_lea.sflag [#allocation4], 1
    %14 = vsyncpa %s13, 0
    loop: start=0, step=1, limit=8
    $region2: #{tpu_custom_call.1} parent=1 // loop_pre_header
      _
    $region3: #{tpu_custom_call.1} parent=1 // loop_header
      %s16 = sphi 0, %s20
      %p17 = scmp.ge.s32.totalorder %s16, 8
      %s23 = sphi 0, %s35
      %s24 = sphi 0, %s31
      %s25 = sphi 0, %s23
      %s26 = sphi 0, %s24
      %s27 = sphi 0, %s25
      %s28 = sphi 0, %s26
      %s42 = sphi 0, %s44
      %s45 = sphi 0, %s42
      %s46 = sphi 0, %s45
      %s62 = sphi 0, %s46
      %s72 = sphi 0, %s74
      %s75 = sphi 0, %s72
      %s76 = sphi 0, %s75
      %s92 = sphi 0, %s76
      %s102 = sphi 0, %s104
      %s105 = sphi 0, %s102
      %s106 = sphi 0, %s105
      %s122 = sphi 0, %s106
      %s126 = sphi 0, %s126
      %s128 = sphi 0, %s126
      %s129 = sphi 0, %s128
      %s143 = sphi 0, %s129
      %s147 = sphi 0, %s147
      %s149 = sphi 0, %s147
      %s150 = sphi 0, %s149
      %s164 = sphi 0, %s150
      %s168 = sphi 0, %s168
      %s170 = sphi 0, %s168
      %s171 = sphi 0, %s170
      %s185 = sphi 0, %s171
      %s189 = sphi 0, %s189
      %s191 = sphi 0, %s189
      %s192 = sphi 0, %s191
      %s206 = sphi 0, %s192
      %s212 = sphi 0, %s214
      %s215 = sphi 0, %s212
      %s216 = sphi 0, %s215
      %s232 = sphi 0, %s216
    $region4: #{tpu_custom_call.1} parent=1 // loop_header_branch
      %19 = sbr.rel (%p17) target = $region8
    $region5: #{tpu_custom_call.1} parent=1 // loop_body
      %s21 = ssub.s32 %s16, 1
      %s22 = ssub.s32 %s16, 2
      %s29 = sadd.s32 1, %s24
      %p30 = scmp.ge.s32.totalorder %s29, 3
      %s31 = scalar_select %p30, 0, %s29
      %s32 = sadd.s32 1, %s23
      %s33 = scalar_select %p30, %s32, %s23
      %p34 = scmp.ge.s32.totalorder %s33, 2
      %s35 = scalar_select %p34, 0, %s33
      %s36 = smul.u32 %s23, 3
      %s37 = sadd.s32 %s36, %s24
      %s38 = smul.u32 %s35, 3
      %s39 = sadd.s32 %s38, %s31
      %s40 = ssub.s32 %s37, %s39
      %p41 = scmp.eq.s32.totalorder %s40, 0
      %s43 = sadd.s32 %s42, 1
      %s44 = scalar_select %p41, %s42, %s43
      %p47 = pneg %p41
      %p48 = scmp.eq.s32.totalorder %s16, 5
      %p49 = por %p47, %p48
      %p50 = scmp.ne.s32.totalorder %s42, %s45
      %p51 = scmp.eq.s32.totalorder %s16, 0
      %p52 = por %p50, %p51
      %p53 = scmp.ne.s32.totalorder %s42, %s45
      %p54 = scmp.eq.s32.totalorder %s21, 5
      %p55 = por %p53, %p54
      %p56 = scmp.ne.s32.totalorder %s45, %s46
      %p57 = scmp.eq.s32.totalorder %s21, 0
      %p58 = por %p56, %p57
      %p59 = scmp.ne.s32.totalorder %s45, %s46
      %p60 = scmp.eq.s32.totalorder %s22, 5
      %p61 = por %p59, %p60
      %p63 = scmp.ne.s32.totalorder %s46, %s62
      %p64 = scmp.eq.s32.totalorder %s22, 0
      %p65 = por %p63, %p64
      %s66 = smul.u32 %s23, 3
      %s67 = sadd.s32 %s66, %s24
      %s68 = smul.u32 %s35, 3
      %s69 = sadd.s32 %s68, %s31
      %s70 = ssub.s32 %s67, %s69
      %p71 = scmp.eq.s32.totalorder %s70, 0
      %s73 = sadd.s32 %s72, 1
      %s74 = scalar_select %p71, %s72, %s73
      %p77 = pneg %p71
      %p78 = scmp.eq.s32.totalorder %s16, 5
      %p79 = por %p77, %p78
      %p80 = scmp.ne.s32.totalorder %s72, %s75
      %p81 = scmp.eq.s32.totalorder %s16, 0
      %p82 = por %p80, %p81
      %p83 = scmp.ne.s32.totalorder %s72, %s75
      %p84 = scmp.eq.s32.totalorder %s21, 5
      %p85 = por %p83, %p84
      %p86 = scmp.ne.s32.totalorder %s75, %s76
      %p87 = scmp.eq.s32.totalorder %s21, 0
      %p88 = por %p86, %p87
      %p89 = scmp.ne.s32.totalorder %s75, %s76
      %p90 = scmp.eq.s32.totalorder %s22, 5
      %p91 = por %p89, %p90
      %p93 = scmp.ne.s32.totalorder %s76, %s92
      %p94 = scmp.eq.s32.totalorder %s22, 0
      %p95 = por %p93, %p94
      %s96 = smul.u32 %s23, 3
      %s97 = sadd.s32 %s96, %s24
      %s98 = smul.u32 %s35, 3
      %s99 = sadd.s32 %s98, %s31
      %s100 = ssub.s32 %s97, %s99
      %p101 = scmp.eq.s32.totalorder %s100, 0
      %s103 = sadd.s32 %s102, 1
      %s104 = scalar_select %p101, %s102, %s103
      %p107 = pneg %p101
      %p108 = scmp.eq.s32.totalorder %s16, 5
      %p109 = por %p107, %p108
      %p110 = scmp.ne.s32.totalorder %s102, %s105
      %p111 = scmp.eq.s32.totalorder %s16, 0
      %p112 = por %p110, %p111
      %p113 = scmp.ne.s32.totalorder %s102, %s105
      %p114 = scmp.eq.s32.totalorder %s21, 5
      %p115 = por %p113, %p114
      %p116 = scmp.ne.s32.totalorder %s105, %s106
      %p117 = scmp.eq.s32.totalorder %s21, 0
      %p118 = por %p116, %p117
      %p119 = scmp.ne.s32.totalorder %s105, %s106
      %p120 = scmp.eq.s32.totalorder %s22, 5
      %p121 = por %p119, %p120
      %p123 = scmp.ne.s32.totalorder %s106, %s122
      %p124 = scmp.eq.s32.totalorder %s22, 0
      %p125 = por %p123, %p124
      %s127 = sadd.s32 %s126, 1
      %p130 = scmp.eq.s32.totalorder %s16, 5
      %p131 = scmp.ne.s32.totalorder %s126, %s128
      %p132 = scmp.eq.s32.totalorder %s16, 0
      %p133 = por %p131, %p132
      %p134 = scmp.ne.s32.totalorder %s126, %s128
      %p135 = scmp.eq.s32.totalorder %s21, 5
      %p136 = por %p134, %p135
      %p137 = scmp.ne.s32.totalorder %s128, %s129
      %p138 = scmp.eq.s32.totalorder %s21, 0
      %p139 = por %p137, %p138
      %p140 = scmp.ne.s32.totalorder %s128, %s129
      %p141 = scmp.eq.s32.totalorder %s22, 5
      %p142 = por %p140, %p141
      %p144 = scmp.ne.s32.totalorder %s129, %s143
      %p145 = scmp.eq.s32.totalorder %s22, 0
      %p146 = por %p144, %p145
      %s148 = sadd.s32 %s147, 1
      %p151 = scmp.eq.s32.totalorder %s16, 5
      %p152 = scmp.ne.s32.totalorder %s147, %s149
      %p153 = scmp.eq.s32.totalorder %s16, 0
      %p154 = por %p152, %p153
      %p155 = scmp.ne.s32.totalorder %s147, %s149
      %p156 = scmp.eq.s32.totalorder %s21, 5
      %p157 = por %p155, %p156
      %p158 = scmp.ne.s32.totalorder %s149, %s150
      %p159 = scmp.eq.s32.totalorder %s21, 0
      %p160 = por %p158, %p159
      %p161 = scmp.ne.s32.totalorder %s149, %s150
      %p162 = scmp.eq.s32.totalorder %s22, 5
      %p163 = por %p161, %p162
      %p165 = scmp.ne.s32.totalorder %s150, %s164
      %p166 = scmp.eq.s32.totalorder %s22, 0
      %p167 = por %p165, %p166
      %s169 = sadd.s32 %s168, 1
      %p172 = scmp.eq.s32.totalorder %s16, 5
      %p173 = scmp.ne.s32.totalorder %s168, %s170
      %p174 = scmp.eq.s32.totalorder %s16, 0
      %p175 = por %p173, %p174
      %p176 = scmp.ne.s32.totalorder %s168, %s170
      %p177 = scmp.eq.s32.totalorder %s21, 5
      %p178 = por %p176, %p177
      %p179 = scmp.ne.s32.totalorder %s170, %s171
      %p180 = scmp.eq.s32.totalorder %s21, 0
      %p181 = por %p179, %p180
      %p182 = scmp.ne.s32.totalorder %s170, %s171
      %p183 = scmp.eq.s32.totalorder %s22, 5
      %p184 = por %p182, %p183
      %p186 = scmp.ne.s32.totalorder %s171, %s185
      %p187 = scmp.eq.s32.totalorder %s22, 0
      %p188 = por %p186, %p187
      %s190 = sadd.s32 %s189, 1
      %p193 = scmp.eq.s32.totalorder %s16, 5
      %p194 = scmp.ne.s32.totalorder %s189, %s191
      %p195 = scmp.eq.s32.totalorder %s16, 0
      %p196 = por %p194, %p195
      %p197 = scmp.ne.s32.totalorder %s189, %s191
      %p198 = scmp.eq.s32.totalorder %s21, 5
      %p199 = por %p197, %p198
      %p200 = scmp.ne.s32.totalorder %s191, %s192
      %p201 = scmp.eq.s32.totalorder %s21, 0
      %p202 = por %p200, %p201
      %p203 = scmp.ne.s32.totalorder %s191, %s192
      %p204 = scmp.eq.s32.totalorder %s22, 5
      %p205 = por %p203, %p204
      %p207 = scmp.ne.s32.totalorder %s192, %s206
      %p208 = scmp.eq.s32.totalorder %s22, 0
      %p209 = por %p207, %p208
      %s210 = ssub.s32 %s23, %s35
      %p211 = scmp.eq.s32.totalorder %s210, 0
      %s213 = sadd.s32 %s212, 1
      %s214 = scalar_select %p211, %s212, %s213
      %p217 = pneg %p211
      %p218 = scmp.eq.s32.totalorder %s16, 5
      %p219 = por %p217, %p218
      %p220 = scmp.ne.s32.totalorder %s212, %s215
      %p221 = scmp.eq.s32.totalorder %s16, 0
      %p222 = por %p220, %p221
      %p223 = scmp.ne.s32.totalorder %s212, %s215
      %p224 = scmp.eq.s32.totalorder %s21, 5
      %p225 = por %p223, %p224
      %p226 = scmp.ne.s32.totalorder %s215, %s216
      %p227 = scmp.eq.s32.totalorder %s21, 0
      %p228 = por %p226, %p227
      %p229 = scmp.ne.s32.totalorder %s215, %s216
      %p230 = scmp.eq.s32.totalorder %s22, 5
      %p231 = por %p229, %p230
      %p233 = scmp.ne.s32.totalorder %s216, %s232
      %p234 = scmp.eq.s32.totalorder %s22, 0
      %p235 = por %p233, %p234
      %p236 = scmp.le.s32.totalorder 1, %s16
      %p237 = scmp.lt.s32.totalorder %s16, 7
      %p238 = pnand %p236, %p237
      %p239 = pneg %p238
      // Predicated region
      $region9: #{tpu_custom_call.1} parent=5 // pred_check
        _
      $region10: #{tpu_custom_call.1} parent=5 // pred_check_branch
        %241 = sbr.rel (%p238) target = $region12
      $region11: #{tpu_custom_call.1} parent=5 // pred_region
        %s242 = ssub.s32 %s16, 1
        // Predicated region
        $region13: #{tpu_custom_call.1} parent=11 // pred_check
          %p243 = pneg %p139
        $region14: #{tpu_custom_call.1} parent=11 // pred_check_branch
          %245 = sbr.rel (%p243) target = $region16
        $region15: #{tpu_custom_call.1} parent=11 // pred_region
          _
        $region16: #{tpu_custom_call.1} parent=11 // pred_fallthru
          _
        // Predicated region
        $region17: #{tpu_custom_call.1} parent=11 // pred_check
          %p246 = pneg %p160
        $region18: #{tpu_custom_call.1} parent=11 // pred_check_branch
          %248 = sbr.rel (%p246) target = $region20
        $region19: #{tpu_custom_call.1} parent=11 // pred_region
          _
        $region20: #{tpu_custom_call.1} parent=11 // pred_fallthru
          _
        // Predicated region
        $region21: #{tpu_custom_call.1} parent=11 // pred_check
          %p249 = pneg %p181
        $region22: #{tpu_custom_call.1} parent=11 // pred_check_branch
          %251 = sbr.rel (%p249) target = $region24
        $region23: #{tpu_custom_call.1} parent=11 // pred_region
          _
        $region24: #{tpu_custom_call.1} parent=11 // pred_fallthru
          _
        // Predicated region
        $region25: #{tpu_custom_call.1} parent=11 // pred_check
          %p252 = pneg %p202
        $region26: #{tpu_custom_call.1} parent=11 // pred_check_branch
          %254 = sbr.rel (%p252) target = $region28
        $region27: #{tpu_custom_call.1} parent=11 // pred_region
          _
        $region28: #{tpu_custom_call.1} parent=11 // pred_fallthru
          _
      $region12: #{tpu_custom_call.1} parent=5 // pred_fallthru
        _
      %p255 = scmp.lt.s32.totalorder %s16, 6
      // Predicated region
      $region29: #{tpu_custom_call.1} parent=5 // pred_check
        %p256 = pneg %p255
      $region30: #{tpu_custom_call.1} parent=5 // pred_check_branch
        %258 = sbr.rel (%p256) target = $region32
      $region31: #{tpu_custom_call.1} parent=5 // pred_region
        // Predicated region
        $region33: #{tpu_custom_call.1} parent=31 // pred_check
          %p259 = pneg %p52
        $region34: #{tpu_custom_call.1} parent=31 // pred_check_branch
          %261 = sbr.rel (%p259) target = $region36
        $region35: #{tpu_custom_call.1} parent=31 // pred_region
          %s262 = smul.u32 %s23, 3
          %s263 = sadd.s32 %s262, %s24
          %s264 = smul.u32 16, %s263
          %p265 = scmp.lt.s32.totalorder %s264, 95
          %s266 = scalar_select %p265, %s264, 95
          %s267 = smul.addr %s266, 8
          %s268 = scalar_lea.vmem %s0, %s267
          %s269 = smul.u32 %s23, 3
          %s270 = sadd.s32 %s269, %s24
          %s271 = smul.u32 16, %s270
        $region36: #{tpu_custom_call.1} parent=31 // pred_fallthru
          _
        // Predicated region
        $region37: #{tpu_custom_call.1} parent=31 // pred_check
          %p272 = pneg %p82
        $region38: #{tpu_custom_call.1} parent=31 // pred_check_branch
          %274 = sbr.rel (%p272) target = $region40
        $region39: #{tpu_custom_call.1} parent=31 // pred_region
          %s275 = smul.u32 %s23, 3
          %s276 = sadd.s32 %s275, %s24
          %s277 = smul.u32 16, %s276
          %p278 = scmp.lt.s32.totalorder %s277, 95
          %s279 = scalar_select %p278, %s277, 95
          %s280 = smul.addr %s279, 8
          %s281 = scalar_lea.vmem %s1, %s280
          %s282 = smul.u32 %s23, 3
          %s283 = sadd.s32 %s282, %s24
          %s284 = smul.u32 16, %s283
        $region40: #{tpu_custom_call.1} parent=31 // pred_fallthru
          _
        // Predicated region
        $region41: #{tpu_custom_call.1} parent=31 // pred_check
          %p285 = pneg %p112
        $region42: #{tpu_custom_call.1} parent=31 // pred_check_branch
          %287 = sbr.rel (%p285) target = $region44
        $region43: #{tpu_custom_call.1} parent=31 // pred_region
          %s288 = smul.u32 %s23, 3
          %s289 = sadd.s32 %s288, %s24
          %p290 = scmp.lt.s32.totalorder %s289, 5
          %s291 = scalar_select %p290, %s289, 5
          %s292 = scalar_lea.vmem %s2, %s291
          %s293 = smul.u32 %s23, 3
          %s294 = sadd.s32 %s293, %s24
        $region44: #{tpu_custom_call.1} parent=31 // pred_fallthru
          _
      $region32: #{tpu_custom_call.1} parent=5 // pred_fallthru
        _
      %p295 = scmp.le.s32.totalorder 1, %s16
      %p296 = scmp.lt.s32.totalorder %s16, 7
      %p297 = pnand %p295, %p296
      %p298 = pneg %p297
      // Predicated region
      $region45: #{tpu_custom_call.1} parent=5 // pred_check
        _
      $region46: #{tpu_custom_call.1} parent=5 // pred_check_branch
        %300 = sbr.rel (%p297) target = $region48
      $region47: #{tpu_custom_call.1} parent=5 // pred_region
        %s301 = ssub.s32 %s16, 1
        %s302 = smul.u32 %s25, 3
        %s303 = sadd.s32 %s302, %s26
        %s304 = smul.u32 16, %s303
        %p305 = scmp.lt.s32.totalorder %s304, 95
        %s306 = scalar_select %p305, %s304, 95
        %s307 = smul.addr %s306, 8
        %s308 = scalar_lea.vmem %s0, %s307
        %p309 = pneg %p58
        %p310 = pneg %p55
        %s311 = smul.u32 %s25, 3
        %s312 = sadd.s32 %s311, %s26
        %s313 = smul.u32 16, %s312
        %p314 = scmp.lt.s32.totalorder %s313, 95
        %s315 = scalar_select %p314, %s313, 95
        %s316 = smul.addr %s315, 8
        %s317 = scalar_lea.vmem %s1, %s316
        %p318 = pneg %p88
        %p319 = pneg %p85
        %s320 = smul.u32 %s25, 3
        %s321 = sadd.s32 %s320, %s26
        %p322 = scmp.lt.s32.totalorder %s321, 5
        %s323 = scalar_select %p322, %s321, 5
        %s324 = scalar_lea.vmem %s2, %s323
        %p325 = pneg %p118
        %p326 = pneg %p115
        %p327 = pneg %p139
        %p328 = pneg %p136
        %p329 = pneg %p160
        %p330 = pneg %p157
        %p331 = pneg %p181
        %p332 = pneg %p178
        %p333 = pneg %p202
        %p334 = pneg %p199
        %p335 = pneg %p228
        %p336 = pneg %p225
        %s337 = sand.u32 %s215, 1
        %s338 = scalar_lea.sflag [#allocation4], %s337
        %s339 = sand.u32 %s215, 1
        %s340 = smul.addr %s339, 16
        %s341 = scalar_lea.vmem [#allocation3], %s340
        %s342 = smul.u32 %s25, 3
        %s343 = sadd.s32 %s342, %s26
        %s344 = smul.u32 16, %s343
        %p345 = scmp.lt.s32.totalorder %s344, 95
        %s346 = scalar_select %p345, %s344, 95
        %s347 = smul.addr %s346, 8
        %s348 = scalar_lea.vmem %s0, %s347
        %s349 = smul.u32 %s25, 3
        %s350 = sadd.s32 %s349, %s26
        %s351 = smul.u32 16, %s350
        %s352 = smul.u32 %s25, 3
        %s353 = sadd.s32 %s352, %s26
        %s354 = smul.u32 16, %s353
        %p355 = scmp.lt.s32.totalorder %s354, 95
        %s356 = scalar_select %p355, %s354, 95
        %s357 = smul.addr %s356, 8
        %s358 = scalar_lea.vmem %s1, %s357
        %s359 = smul.u32 %s25, 3
        %s360 = sadd.s32 %s359, %s26
        %s361 = smul.u32 16, %s360
        %s362 = smul.u32 %s25, 3
        %s363 = sadd.s32 %s362, %s26
        %p364 = scmp.lt.s32.totalorder %s363, 5
        %s365 = scalar_select %p364, %s363, 5
        %s366 = scalar_lea.vmem %s2, %s365
        %s367 = smul.u32 %s25, 3
        %s368 = sadd.s32 %s367, %s26
        %p369 = scmp.eq.s32.totalorder %s26, 0
        // Predicated region
        $region49: #{tpu_custom_call.1} parent=47 // pred_check
          %p370 = pneg %p369
        $region50: #{tpu_custom_call.1} parent=47 // pred_check_branch
          %372 = sbr.rel (%p370) target = $region52
        $region51: #{tpu_custom_call.1} parent=47 // pred_region
          %vm373 = vcmask 261120
          %374 = vst.msk [vmem:[#allocation2] sm:$0xff] %vm373, 0.0
          %375 = vst.msk [vmem:[#allocation2 + $0x8] sm:$0xff] %vm373, 0.0
        $region52: #{tpu_custom_call.1} parent=47 // pred_fallthru
          _
        %v376 = vld [vmem:[%s348] sm:$0xff]
        %v377 = vld [vmem:[%s348 + $0x8] sm:$0xff]
        %v378 = vld [vmem:[%s348 + $0x10] sm:$0xff]
        %v379 = vld [vmem:[%s348 + $0x18] sm:$0xff]
        %v380 = vld [vmem:[%s348 + $0x20] sm:$0xff]
        %v381 = vld [vmem:[%s348 + $0x28] sm:$0xff]
        %v382 = vld [vmem:[%s348 + $0x30] sm:$0xff]
        %v383 = vld [vmem:[%s348 + $0x38] sm:$0xff]
        %v384 = vld [vmem:[%s348 + $0x40] sm:$0xff]
        %v385 = vld [vmem:[%s348 + $0x48] sm:$0xff]
        %v386 = vld [vmem:[%s348 + $0x50] sm:$0xff]
        %v387 = vld [vmem:[%s348 + $0x58] sm:$0xff]
        %v388 = vld [vmem:[%s348 + $0x60] sm:$0xff]
        %v389 = vld [vmem:[%s348 + $0x68] sm:$0xff]
        %v390 = vld [vmem:[%s348 + $0x70] sm:$0xff]
        %v391 = vld [vmem:[%s348 + $0x78] sm:$0xff]
        %v392 = vld [vmem:[%s4] sm:$0x3]
        %394 = vset.pattern.permute.xlu0 0
        %395 = vperm.xlu0 %394, %v376
        %v396 = vpop.permute.xlu0 %395
        %399 = vset.pattern.permute.xlu0 0
        %400 = vperm.xlu0 %399, %v377
        %v401 = vpop.permute.xlu0 %400
        %404 = vset.pattern.permute.xlu0 0
        %405 = vperm.xlu0 %404, %v378
        %v406 = vpop.permute.xlu0 %405
        %409 = vset.pattern.permute.xlu0 0
        %410 = vperm.xlu0 %409, %v379
        %v411 = vpop.permute.xlu0 %410
        %414 = vset.pattern.permute.xlu0 0
        %415 = vperm.xlu0 %414, %v380
        %v416 = vpop.permute.xlu0 %415
        %419 = vset.pattern.permute.xlu0 0
        %420 = vperm.xlu0 %419, %v381
        %v421 = vpop.permute.xlu0 %420
        %424 = vset.pattern.permute.xlu0 0
        %425 = vperm.xlu0 %424, %v382
        %v426 = vpop.permute.xlu0 %425
        %429 = vset.pattern.permute.xlu0 0
        %430 = vperm.xlu0 %429, %v383
        %v431 = vpop.permute.xlu0 %430
        %434 = vset.pattern.permute.xlu0 0
        %435 = vperm.xlu0 %434, %v384
        %v436 = vpop.permute.xlu0 %435
        %439 = vset.pattern.permute.xlu0 0
        %440 = vperm.xlu0 %439, %v385
        %v441 = vpop.permute.xlu0 %440
        %444 = vset.pattern.permute.xlu0 0
        %445 = vperm.xlu0 %444, %v386
        %v446 = vpop.permute.xlu0 %445
        %449 = vset.pattern.permute.xlu0 0
        %450 = vperm.xlu0 %449, %v387
        %v451 = vpop.permute.xlu0 %450
        %454 = vset.pattern.permute.xlu0 0
        %455 = vperm.xlu0 %454, %v388
        %v456 = vpop.permute.xlu0 %455
        %459 = vset.pattern.permute.xlu0 0
        %460 = vperm.xlu0 %459, %v389
        %v461 = vpop.permute.xlu0 %460
        %464 = vset.pattern.permute.xlu0 0
        %465 = vperm.xlu0 %464, %v390
        %v466 = vpop.permute.xlu0 %465
        %469 = vset.pattern.permute.xlu0 0
        %470 = vperm.xlu0 %469, %v391
        %v471 = vpop.permute.xlu0 %470
        %v473 = vperm.slane %v392, 0
        %v474 = vmul.f32 %v396, %v473
        %v475 = vmul.f32 %v401, %v473
        %v476 = vmul.f32 %v406, %v473
        %v477 = vmul.f32 %v411, %v473
        %v478 = vmul.f32 %v416, %v473
        %v479 = vmul.f32 %v421, %v473
        %v480 = vmul.f32 %v426, %v473
        %v481 = vmul.f32 %v431, %v473
        %v482 = vmul.f32 %v436, %v473
        %v483 = vmul.f32 %v441, %v473
        %v484 = vmul.f32 %v446, %v473
        %v485 = vmul.f32 %v451, %v473
        %v486 = vmul.f32 %v456, %v473
        %v487 = vmul.f32 %v461, %v473
        %v488 = vmul.f32 %v466, %v473
        %v489 = vmul.f32 %v471, %v473
        %490 = vset.pattern.permute.xlu0 1
        %491 = vperm.xlu0 %490, %v376
        %v492 = vpop.permute.xlu0 %491
        %494 = vset.pattern.permute.xlu0 1
        %495 = vperm.xlu0 %494, %v377
        %v496 = vpop.permute.xlu0 %495
        %498 = vset.pattern.permute.xlu0 1
        %499 = vperm.xlu0 %498, %v378
        %v500 = vpop.permute.xlu0 %499
        %502 = vset.pattern.permute.xlu0 1
        %503 = vperm.xlu0 %502, %v379
        %v504 = vpop.permute.xlu0 %503
        %506 = vset.pattern.permute.xlu0 1
        %507 = vperm.xlu0 %506, %v380
        %v508 = vpop.permute.xlu0 %507
        %510 = vset.pattern.permute.xlu0 1
        %511 = vperm.xlu0 %510, %v381
        %v512 = vpop.permute.xlu0 %511
        %514 = vset.pattern.permute.xlu0 1
        %515 = vperm.xlu0 %514, %v382
        %v516 = vpop.permute.xlu0 %515
        %518 = vset.pattern.permute.xlu0 1
        %519 = vperm.xlu0 %518, %v383
        %v520 = vpop.permute.xlu0 %519
        %522 = vset.pattern.permute.xlu0 1
        %523 = vperm.xlu0 %522, %v384
        %v524 = vpop.permute.xlu0 %523
        %526 = vset.pattern.permute.xlu0 1
        %527 = vperm.xlu0 %526, %v385
        %v528 = vpop.permute.xlu0 %527
        %530 = vset.pattern.permute.xlu0 1
        %531 = vperm.xlu0 %530, %v386
        %v532 = vpop.permute.xlu0 %531
        %534 = vset.pattern.permute.xlu0 1
        %535 = vperm.xlu0 %534, %v387
        %v536 = vpop.permute.xlu0 %535
        %538 = vset.pattern.permute.xlu0 1
        %539 = vperm.xlu0 %538, %v388
        %v540 = vpop.permute.xlu0 %539
        %542 = vset.pattern.permute.xlu0 1
        %543 = vperm.xlu0 %542, %v389
        %v544 = vpop.permute.xlu0 %543
        %546 = vset.pattern.permute.xlu0 1
        %547 = vperm.xlu0 %546, %v390
        %v548 = vpop.permute.xlu0 %547
        %550 = vset.pattern.permute.xlu0 1
        %551 = vperm.xlu0 %550, %v391
        %v552 = vpop.permute.xlu0 %551
        %v554 = vperm.slane %v392, 1
        %v555 = vmul.f32 %v492, %v554
        %v556 = vmul.f32 %v496, %v554
        %v557 = vmul.f32 %v500, %v554
        %v558 = vmul.f32 %v504, %v554
        %v559 = vmul.f32 %v508, %v554
        %v560 = vmul.f32 %v512, %v554
        %v561 = vmul.f32 %v516, %v554
        %v562 = vmul.f32 %v520, %v554
        %v563 = vmul.f32 %v524, %v554
        %v564 = vmul.f32 %v528, %v554
        %v565 = vmul.f32 %v532, %v554
        %v566 = vmul.f32 %v536, %v554
        %v567 = vmul.f32 %v540, %v554
        %v568 = vmul.f32 %v544, %v554
        %v569 = vmul.f32 %v548, %v554
        %v570 = vmul.f32 %v552, %v554
        %v571 = vadd.f32 %v474, %v555
        %v572 = vadd.f32 %v475, %v556
        %v573 = vadd.f32 %v476, %v557
        %v574 = vadd.f32 %v477, %v558
        %v575 = vadd.f32 %v478, %v559
        %v576 = vadd.f32 %v479, %v560
        %v577 = vadd.f32 %v480, %v561
        %v578 = vadd.f32 %v481, %v562
        %v579 = vadd.f32 %v482, %v563
        %v580 = vadd.f32 %v483, %v564
        %v581 = vadd.f32 %v484, %v565
        %v582 = vadd.f32 %v485, %v566
        %v583 = vadd.f32 %v486, %v567
        %v584 = vadd.f32 %v487, %v568
        %v585 = vadd.f32 %v488, %v569
        %v586 = vadd.f32 %v489, %v570
        %v587 = vld [vmem:[%s5] sm:$0x1]
        %v589 = vperm.slane %v587, 0
        %v591 = vadd.f32 %v571, %v589
        %v592 = vadd.f32 %v572, %v589
        %v593 = vadd.f32 %v573, %v589
        %v594 = vadd.f32 %v574, %v589
        %v595 = vadd.f32 %v575, %v589
        %v596 = vadd.f32 %v576, %v589
        %v597 = vadd.f32 %v577, %v589
        %v598 = vadd.f32 %v578, %v589
        %v599 = vadd.f32 %v579, %v589
        %v600 = vadd.f32 %v580, %v589
        %v601 = vadd.f32 %v581, %v589
        %v602 = vadd.f32 %v582, %v589
        %v603 = vadd.f32 %v583, %v589
        %v604 = vadd.f32 %v584, %v589
        %v605 = vadd.f32 %v585, %v589
        %v606 = vadd.f32 %v586, %v589
        %v607 = vmax.f32 %v591, 0.0
        %v608 = vmax.f32 %v592, 0.0
        %v609 = vmax.f32 %v593, 0.0
        %v610 = vmax.f32 %v594, 0.0
        %v611 = vmax.f32 %v595, 0.0
        %v612 = vmax.f32 %v596, 0.0
        %v613 = vmax.f32 %v597, 0.0
        %v614 = vmax.f32 %v598, 0.0
        %v615 = vmax.f32 %v599, 0.0
        %v616 = vmax.f32 %v600, 0.0
        %v617 = vmax.f32 %v601, 0.0
        %v618 = vmax.f32 %v602, 0.0
        %v619 = vmax.f32 %v603, 0.0
        %v620 = vmax.f32 %v604, 0.0
        %v621 = vmax.f32 %v605, 0.0
        %v622 = vmax.f32 %v606, 0.0
        %v623 = vld [vmem:[%s358] sm:$0xff]
        %v624 = vld [vmem:[%s358 + $0x8] sm:$0xff]
        %v625 = vld [vmem:[%s358 + $0x10] sm:$0xff]
        %v626 = vld [vmem:[%s358 + $0x18] sm:$0xff]
        %v627 = vld [vmem:[%s358 + $0x20] sm:$0xff]
        %v628 = vld [vmem:[%s358 + $0x28] sm:$0xff]
        %v629 = vld [vmem:[%s358 + $0x30] sm:$0xff]
        %v630 = vld [vmem:[%s358 + $0x38] sm:$0xff]
        %v631 = vld [vmem:[%s358 + $0x40] sm:$0xff]
        %v632 = vld [vmem:[%s358 + $0x48] sm:$0xff]
        %v633 = vld [vmem:[%s358 + $0x50] sm:$0xff]
        %v634 = vld [vmem:[%s358 + $0x58] sm:$0xff]
        %v635 = vld [vmem:[%s358 + $0x60] sm:$0xff]
        %v636 = vld [vmem:[%s358 + $0x68] sm:$0xff]
        %v637 = vld [vmem:[%s358 + $0x70] sm:$0xff]
        %v638 = vld [vmem:[%s358 + $0x78] sm:$0xff]
        %v639 = vlaneseq
        %v640 = vand.u32 %v639, 127
        %641 = vset.pattern.permute.xlu0 0
        %642 = vperm.xlu0 %641, %v623
        %v643 = vpop.permute.xlu0 %642
        %644 = vset.pattern.permute.xlu0 0
        %645 = vperm.xlu0 %644, %v624
        %v646 = vpop.permute.xlu0 %645
        %647 = vset.pattern.permute.xlu0 0
        %648 = vperm.xlu0 %647, %v625
        %v649 = vpop.permute.xlu0 %648
        %650 = vset.pattern.permute.xlu0 0
        %651 = vperm.xlu0 %650, %v626
        %v652 = vpop.permute.xlu0 %651
        %653 = vset.pattern.permute.xlu0 0
        %654 = vperm.xlu0 %653, %v627
        %v655 = vpop.permute.xlu0 %654
        %656 = vset.pattern.permute.xlu0 0
        %657 = vperm.xlu0 %656, %v628
        %v658 = vpop.permute.xlu0 %657
        %659 = vset.pattern.permute.xlu0 0
        %660 = vperm.xlu0 %659, %v629
        %v661 = vpop.permute.xlu0 %660
        %662 = vset.pattern.permute.xlu0 0
        %663 = vperm.xlu0 %662, %v630
        %v664 = vpop.permute.xlu0 %663
        %665 = vset.pattern.permute.xlu0 0
        %666 = vperm.xlu0 %665, %v631
        %v667 = vpop.permute.xlu0 %666
        %668 = vset.pattern.permute.xlu0 0
        %669 = vperm.xlu0 %668, %v632
        %v670 = vpop.permute.xlu0 %669
        %671 = vset.pattern.permute.xlu0 0
        %672 = vperm.xlu0 %671, %v633
        %v673 = vpop.permute.xlu0 %672
        %674 = vset.pattern.permute.xlu0 0
        %675 = vperm.xlu0 %674, %v634
        %v676 = vpop.permute.xlu0 %675
        %677 = vset.pattern.permute.xlu0 0
        %678 = vperm.xlu0 %677, %v635
        %v679 = vpop.permute.xlu0 %678
        %680 = vset.pattern.permute.xlu0 0
        %681 = vperm.xlu0 %680, %v636
        %v682 = vpop.permute.xlu0 %681
        %683 = vset.pattern.permute.xlu0 0
        %684 = vperm.xlu0 %683, %v637
        %v685 = vpop.permute.xlu0 %684
        %686 = vset.pattern.permute.xlu0 0
        %687 = vperm.xlu0 %686, %v638
        %v688 = vpop.permute.xlu0 %687
        %vm689 = vcmp.eq.s32.totalorder %v643, %v640
        %vm690 = vcmp.eq.s32.totalorder %v646, %v640
        %vm691 = vcmp.eq.s32.totalorder %v649, %v640
        %vm692 = vcmp.eq.s32.totalorder %v652, %v640
        %vm693 = vcmp.eq.s32.totalorder %v655, %v640
        %vm694 = vcmp.eq.s32.totalorder %v658, %v640
        %vm695 = vcmp.eq.s32.totalorder %v661, %v640
        %vm696 = vcmp.eq.s32.totalorder %v664, %v640
        %vm697 = vcmp.eq.s32.totalorder %v667, %v640
        %vm698 = vcmp.eq.s32.totalorder %v670, %v640
        %vm699 = vcmp.eq.s32.totalorder %v673, %v640
        %vm700 = vcmp.eq.s32.totalorder %v676, %v640
        %vm701 = vcmp.eq.s32.totalorder %v679, %v640
        %vm702 = vcmp.eq.s32.totalorder %v682, %v640
        %vm703 = vcmp.eq.s32.totalorder %v685, %v640
        %vm704 = vcmp.eq.s32.totalorder %v688, %v640
        %v705 = vsel %vm689, 1, 0
        %v706 = vsel %vm690, 1, 0
        %v707 = vsel %vm691, 1, 0
        %v708 = vsel %vm692, 1, 0
        %v709 = vsel %vm693, 1, 0
        %v710 = vsel %vm694, 1, 0
        %v711 = vsel %vm695, 1, 0
        %v712 = vsel %vm696, 1, 0
        %v713 = vsel %vm697, 1, 0
        %v714 = vsel %vm698, 1, 0
        %v715 = vsel %vm699, 1, 0
        %v716 = vsel %vm700, 1, 0
        %v717 = vsel %vm701, 1, 0
        %v718 = vsel %vm702, 1, 0
        %v719 = vsel %vm703, 1, 0
        %v720 = vsel %vm704, 1, 0
        %v721 = vcvt.s32.f32 %v705
        %v722 = vcvt.s32.f32 %v706
        %v723 = vcvt.s32.f32 %v707
        %v724 = vcvt.s32.f32 %v708
        %v725 = vcvt.s32.f32 %v709
        %v726 = vcvt.s32.f32 %v710
        %v727 = vcvt.s32.f32 %v711
        %v728 = vcvt.s32.f32 %v712
        %v729 = vcvt.s32.f32 %v713
        %v730 = vcvt.s32.f32 %v714
        %v731 = vcvt.s32.f32 %v715
        %v732 = vcvt.s32.f32 %v716
        %v733 = vcvt.s32.f32 %v717
        %v734 = vcvt.s32.f32 %v718
        %v735 = vcvt.s32.f32 %v719
        %v736 = vcvt.s32.f32 %v720
        %v737 = vld [vmem:[%s3] sm:$0xff]
        %v738 = vld [vmem:[%s3 + $0x8] sm:$0xff]
        %vm739 = vcmask 130048
        %v741 = vsel %vm739, %v721, 0
        %v744 = vsel %vm739, %v722, 0
        %v747 = vsel %vm739, %v723, 0
        %v750 = vsel %vm739, %v724, 0
        %v753 = vsel %vm739, %v725, 0
        %v756 = vsel %vm739, %v726, 0
        %v759 = vsel %vm739, %v727, 0
        %v762 = vsel %vm739, %v728, 0
        %v765 = vsel %vm739, %v729, 0
        %v768 = vsel %vm739, %v730, 0
        %v771 = vsel %vm739, %v731, 0
        %v774 = vsel %vm739, %v732, 0
        %v777 = vsel %vm739, %v733, 0
        %v780 = vsel %vm739, %v734, 0
        %v783 = vsel %vm739, %v735, 0
        %v786 = vsel %vm739, %v736, 0
        %788 = vmatpush.msra.mxu0 0.0
        %789 = vmatpush.msra.mxu0 0.0
        %790 = vmatpush.msra.mxu0 0.0
        %791 = vmatpush.msra.mxu0 0.0
        %792 = vmatpush.msra.mxu0 0.0
        %793 = vmatpush.msra.mxu0 0.0
        %794 = vmatpush.msra.mxu0 0.0
        %795 = vmatpush.msra.mxu0 0.0
        %796 = vmatpush.msra.mxu0 0.0
        %797 = vmatpush.msra.mxu0 0.0
        %798 = vmatpush.msra.mxu0 0.0
        %799 = vmatpush.msra.mxu0 0.0
        %800 = vmatpush.msra.mxu0 0.0
        %801 = vmatpush.msra.mxu0 0.0
        %802 = vmatpush.msra.mxu0 %v738
        %803 = vmatpush.msra.mxu0 %v737
        %804 = vmatmul.f32.gmra.mxu0 %v741
        %v805 = vpop.f32.mrf.mxu0
        %v806 = vadd.f32 0.0, %v805
        %807 = vmatmul.f32.gmra.mxu0 %v744
        %v808 = vpop.f32.mrf.mxu0
        %v809 = vadd.f32 0.0, %v808
        %810 = vmatmul.f32.gmra.mxu0 %v747
        %v811 = vpop.f32.mrf.mxu0
        %v812 = vadd.f32 0.0, %v811
        %813 = vmatmul.f32.gmra.mxu0 %v750
        %v814 = vpop.f32.mrf.mxu0
        %v815 = vadd.f32 0.0, %v814
        %816 = vmatmul.f32.gmra.mxu0 %v753
        %v817 = vpop.f32.mrf.mxu0
        %v818 = vadd.f32 0.0, %v817
        %819 = vmatmul.f32.gmra.mxu0 %v756
        %v820 = vpop.f32.mrf.mxu0
        %v821 = vadd.f32 0.0, %v820
        %822 = vmatmul.f32.gmra.mxu0 %v759
        %v823 = vpop.f32.mrf.mxu0
        %v824 = vadd.f32 0.0, %v823
        %825 = vmatmul.f32.gmra.mxu0 %v762
        %v826 = vpop.f32.mrf.mxu0
        %v827 = vadd.f32 0.0, %v826
        %828 = vmatmul.f32.gmra.mxu0 %v765
        %v829 = vpop.f32.mrf.mxu0
        %v830 = vadd.f32 0.0, %v829
        %831 = vmatmul.f32.gmra.mxu0 %v768
        %v832 = vpop.f32.mrf.mxu0
        %v833 = vadd.f32 0.0, %v832
        %834 = vmatmul.f32.gmra.mxu0 %v771
        %v835 = vpop.f32.mrf.mxu0
        %v836 = vadd.f32 0.0, %v835
        %837 = vmatmul.f32.gmra.mxu0 %v774
        %v838 = vpop.f32.mrf.mxu0
        %v839 = vadd.f32 0.0, %v838
        %840 = vmatmul.f32.gmra.mxu0 %v777
        %v841 = vpop.f32.mrf.mxu0
        %v842 = vadd.f32 0.0, %v841
        %843 = vmatmul.f32.gmra.mxu0 %v780
        %v844 = vpop.f32.mrf.mxu0
        %v845 = vadd.f32 0.0, %v844
        %846 = vmatmul.f32.gmra.mxu0 %v783
        %v847 = vpop.f32.mrf.mxu0
        %v848 = vadd.f32 0.0, %v847
        %849 = vmatmul.f32.gmra.mxu0 %v786
        %v850 = vpop.f32.mrf.mxu0
        %v851 = vadd.f32 0.0, %v850
        %852 = vdwg.mxu0
        %v853 = vmul.f32 %v806, %v607
        %v854 = vmul.f32 %v809, %v608
        %v855 = vmul.f32 %v812, %v609
        %v856 = vmul.f32 %v815, %v610
        %v857 = vmul.f32 %v818, %v611
        %v858 = vmul.f32 %v821, %v612
        %v859 = vmul.f32 %v824, %v613
        %v860 = vmul.f32 %v827, %v614
        %v861 = vmul.f32 %v830, %v615
        %v862 = vmul.f32 %v833, %v616
        %v863 = vmul.f32 %v836, %v617
        %v864 = vmul.f32 %v839, %v618
        %v865 = vmul.f32 %v842, %v619
        %v866 = vmul.f32 %v845, %v620
        %v867 = vmul.f32 %v848, %v621
        %v868 = vmul.f32 %v851, %v622
        %v869 = vld [vmem:[%s6] sm:$0xff]
        %v870 = vld [vmem:[%s6 + $0x8] sm:$0xff]
        %v871 = vld [vmem:[%s6 + $0x10] sm:$0xff]
        %v872 = vld [vmem:[%s6 + $0x18] sm:$0xff]
        %v873 = vld [vmem:[%s6 + $0x20] sm:$0xff]
        %v874 = vld [vmem:[%s6 + $0x28] sm:$0xff]
        %v875 = vld [vmem:[%s6 + $0x30] sm:$0xff]
        %v876 = vld [vmem:[%s6 + $0x38] sm:$0xff]
        %v877 = vld [vmem:[%s6 + $0x40] sm:$0xff]
        %v878 = vld [vmem:[%s6 + $0x48] sm:$0xff]
        %v879 = vld [vmem:[%s6 + $0x50] sm:$0xff]
        %v880 = vld [vmem:[%s6 + $0x58] sm:$0xff]
        %v881 = vld [vmem:[%s6 + $0x60] sm:$0xff]
        %v882 = vld [vmem:[%s6 + $0x68] sm:$0xff]
        %v883 = vld [vmem:[%s6 + $0x70] sm:$0xff]
        %v884 = vld [vmem:[%s6 + $0x78] sm:$0xff]
        %885 = vmatpush.msra.mxu0 %v884
        %886 = vmatpush.msra.mxu0 %v883
        %887 = vmatpush.msra.mxu0 %v882
        %888 = vmatpush.msra.mxu0 %v881
        %889 = vmatpush.msra.mxu0 %v880
        %890 = vmatpush.msra.mxu0 %v879
        %891 = vmatpush.msra.mxu0 %v878
        %892 = vmatpush.msra.mxu0 %v877
        %893 = vmatpush.msra.mxu0 %v876
        %894 = vmatpush.msra.mxu0 %v875
        %895 = vmatpush.msra.mxu0 %v874
        %896 = vmatpush.msra.mxu0 %v873
        %897 = vmatpush.msra.mxu0 %v872
        %898 = vmatpush.msra.mxu0 %v871
        %899 = vmatpush.msra.mxu0 %v870
        %900 = vmatpush.msra.mxu0 %v869
        %901 = vmatmul.f32.gmra.mxu0 %v853
        %v902 = vpop.f32.mrf.mxu0
        %v903 = vadd.f32 0.0, %v902
        %904 = vmatmul.f32.gmra.mxu0 %v854
        %v905 = vpop.f32.mrf.mxu0
        %v906 = vadd.f32 0.0, %v905
        %907 = vmatmul.f32.gmra.mxu0 %v855
        %v908 = vpop.f32.mrf.mxu0
        %v909 = vadd.f32 0.0, %v908
        %910 = vmatmul.f32.gmra.mxu0 %v856
        %v911 = vpop.f32.mrf.mxu0
        %v912 = vadd.f32 0.0, %v911
        %913 = vmatmul.f32.gmra.mxu0 %v857
        %v914 = vpop.f32.mrf.mxu0
        %v915 = vadd.f32 0.0, %v914
        %916 = vmatmul.f32.gmra.mxu0 %v858
        %v917 = vpop.f32.mrf.mxu0
        %v918 = vadd.f32 0.0, %v917
        %919 = vmatmul.f32.gmra.mxu0 %v859
        %v920 = vpop.f32.mrf.mxu0
        %v921 = vadd.f32 0.0, %v920
        %922 = vmatmul.f32.gmra.mxu0 %v860
        %v923 = vpop.f32.mrf.mxu0
        %v924 = vadd.f32 0.0, %v923
        %925 = vmatmul.f32.gmra.mxu0 %v861
        %v926 = vpop.f32.mrf.mxu0
        %v927 = vadd.f32 0.0, %v926
        %928 = vmatmul.f32.gmra.mxu0 %v862
        %v929 = vpop.f32.mrf.mxu0
        %v930 = vadd.f32 0.0, %v929
        %931 = vmatmul.f32.gmra.mxu0 %v863
        %v932 = vpop.f32.mrf.mxu0
        %v933 = vadd.f32 0.0, %v932
        %934 = vmatmul.f32.gmra.mxu0 %v864
        %v935 = vpop.f32.mrf.mxu0
        %v936 = vadd.f32 0.0, %v935
        %937 = vmatmul.f32.gmra.mxu0 %v865
        %v938 = vpop.f32.mrf.mxu0
        %v939 = vadd.f32 0.0, %v938
        %940 = vmatmul.f32.gmra.mxu0 %v866
        %v941 = vpop.f32.mrf.mxu0
        %v942 = vadd.f32 0.0, %v941
        %943 = vmatmul.f32.gmra.mxu0 %v867
        %v944 = vpop.f32.mrf.mxu0
        %v945 = vadd.f32 0.0, %v944
        %946 = vmatmul.f32.gmra.mxu0 %v868
        %v947 = vpop.f32.mrf.mxu0
        %v948 = vadd.f32 0.0, %v947
        %949 = vdwg.mxu0
        %v950 = vlaneseq
        %v951 = vshrl.u32 %v950, 7
        %v952 = vadd.s32 %v951, 8
        %v953 = vld [vmem:[%s366] sm:$0x1]
        %v954 = vperm.slane %v953, 0
        %vm955 = vcmp.eq.s32.totalorder %v951, %v954
        %vm956 = vcmp.eq.s32.totalorder %v952, %v954
        %v957 = vsel %vm955, 1, 0
        %v958 = vsel %vm956, 1, 0
        %v959 = vcvt.s32.f32 %v957
        %v960 = vcvt.s32.f32 %v958
        %v961 = vld [vmem:[#allocation2] sm:$0xff]
        %v962 = vld [vmem:[#allocation2 + $0x8] sm:$0xff]
        %963 = vmatpush.msra.mxu0 %v948
        %964 = vmatpush.msra.mxu0 %v945
        %965 = vmatpush.msra.mxu0 %v942
        %966 = vmatpush.msra.mxu0 %v939
        %967 = vmatpush.msra.mxu0 %v936
        %968 = vmatpush.msra.mxu0 %v933
        %969 = vmatpush.msra.mxu0 %v930
        %970 = vmatpush.msra.mxu0 %v927
        %971 = vmatpush.msra.mxu0 %v924
        %972 = vmatpush.msra.mxu0 %v921
        %973 = vmatpush.msra.mxu0 %v918
        %974 = vmatpush.msra.mxu0 %v915
        %975 = vmatpush.msra.mxu0 %v912
        %976 = vmatpush.msra.mxu0 %v909
        %977 = vmatpush.msra.mxu0 %v906
        %978 = vmatpush.msra.mxu0 %v903
        %979 = vmatmul.f32.gmra.mxu0 %v959
        %v980 = vpop.f32.mrf.mxu0
        %v981 = vadd.f32 0.0, %v980
        %982 = vmatmul.f32.gmra.mxu0 %v960
        %v983 = vpop.f32.mrf.mxu0
        %v984 = vadd.f32 0.0, %v983
        %985 = vdwg.mxu0
        %v986 = vadd.f32 %v961, %v981
        %v987 = vadd.f32 %v962, %v984
        %vm988 = vcmask 261120
        %989 = vst.msk [vmem:[#allocation2] sm:$0xff] %vm988, %v986
        %990 = vst.msk [vmem:[#allocation2 + $0x8] sm:$0xff] %vm988, %v987
        %p991 = scmp.eq.s32.totalorder %s26, 2
        // Predicated region
        $region53: #{tpu_custom_call.1} parent=47 // pred_check
          %p992 = pneg %p991
        $region54: #{tpu_custom_call.1} parent=47 // pred_check_branch
          %994 = sbr.rel (%p992) target = $region56
        $region55: #{tpu_custom_call.1} parent=47 // pred_region
          %v995 = vld [vmem:[#allocation2] sm:$0xff]
          %v996 = vld [vmem:[#allocation2 + $0x8] sm:$0xff]
          %997 = vst.msk [vmem:[%s341] sm:$0xff] %vm988, %v995
          %998 = vst.msk [vmem:[%s341 + $0x8] sm:$0xff] %vm988, %v996
        $region56: #{tpu_custom_call.1} parent=47 // pred_fallthru
          _
        %s999 = sand.u32 %s215, 1
        %s1000 = scalar_lea.sflag [#allocation4], %s999
        %s1001 = sand.u32 %s215, 1
        %s1002 = smul.addr %s1001, 16
        %s1003 = scalar_lea.vmem [#allocation3], %s1002
        // Predicated region
        $region57: #{tpu_custom_call.1} parent=47 // pred_check
          %p1004 = pneg %p225
        $region58: #{tpu_custom_call.1} parent=47 // pred_check_branch
          %1006 = sbr.rel (%p1004) target = $region60
        $region59: #{tpu_custom_call.1} parent=47 // pred_region
          %1008 = vsyncadd %s1000, 0
          %s1009 = smul.addr %s25, 2
          %s1010 = smul.addr %s1009, 8
          %s1011 = scalar_lea.hbm %s7, %s1010
          %s1012 = sshll.u32 %s1003, 4
          %s1013 = int_to_ptr.vmem [resolvable:$true] %s1012
          %s1014 = sshll.u32 %s1011, 4
          %s1015 = int_to_ptr.hbm [resolvable:$true] %s1014
          %1020 = dma.vmem_to_hbm [thread:$0]  %s1013, 256, %s1015, %s1000, 128, 128, 8
        $region60: #{tpu_custom_call.1} parent=47 // pred_fallthru
          _
      $region48: #{tpu_custom_call.1} parent=5 // pred_fallthru
        _
      %p1021 = scmp.le.s32.totalorder 2, %s16
      // Predicated region
      $region61: #{tpu_custom_call.1} parent=5 // pred_check
        %p1022 = pneg %p1021
      $region62: #{tpu_custom_call.1} parent=5 // pred_check_branch
        %1024 = sbr.rel (%p1022) target = $region64
      $region63: #{tpu_custom_call.1} parent=5 // pred_region
        %s1025 = ssub.s32 %s16, 2
        // Predicated region
        $region65: #{tpu_custom_call.1} parent=63 // pred_check
          %p1026 = pneg %p231
        $region66: #{tpu_custom_call.1} parent=63 // pred_check_branch
          %1028 = sbr.rel (%p1026) target = $region68
        $region67: #{tpu_custom_call.1} parent=63 // pred_region
          %s1029 = sand.u32 %s216, 1
          %s1030 = scalar_lea.sflag [#allocation4], %s1029
          %s1031 = sand.u32 %s216, 1
          %s1032 = smul.addr %s1031, 16
          %s1033 = scalar_lea.vmem [#allocation3], %s1032
          %1035 = dma.done %s1030, 256
        $region68: #{tpu_custom_call.1} parent=63 // pred_fallthru
          _
      $region64: #{tpu_custom_call.1} parent=5 // pred_fallthru
        _
    $region6: #{tpu_custom_call.1} parent=1 // loop_footer
      %s20 = sadd.s32 1, %s16
    $region7: #{tpu_custom_call.1} parent=1 // loop_footer_branch
      %15 = sbr.rel target = $region3
    $region8: #{tpu_custom_call.1} parent=1 // loop_exit
      _
    %1036 = vsyncpa [#allocation4], 1
    %s1037 = scalar_lea.sflag [#allocation4], 1
    %1038 = vsyncpa %s1037, 1

</llo_original>
